<compile_context>
chip_gen: v7x
topology: tpu7x:2x2x1
jax: 0.10.0
libtpu: 0.0.40
codegen_flags: <defaults>
</compile_context>

<pallas_src>
import functools

import jax
import jax.numpy as jnp
from jax.experimental import pallas as pl
from jax.experimental.pallas import tpu as pltpu

_LANE = 128
_SUBLANE_PAD = 16  # multiple of the sublane tile for both f32 (8) and bf16 (16)


def _round_up(x, m):
    return ((x + m - 1) // m) * m


def _mass_balance_kernel(yp_ref, y_ref, fr_ref, out_ref, *,
                         batch, tile_b, material_num, dim):
    """One batch tile -> per-column partial sums of squared errors.

    out block (1, 8, 128):
      row 0, lanes [0:D)  = sum over valid rows of (y_pred - y)^2 per column
      row 1, lanes [0:M)  = sum over valid rows of (temp - frac)^2 per column
    """
    D = dim
    M = material_num

    yp = yp_ref[...].astype(jnp.float32)   # (tile_b, D)
    yt = y_ref[...].astype(jnp.float32)    # (tile_b, D)
    fr = fr_ref[...].astype(jnp.float32)   # (tile_b, M)

    # MSE(y_pred, y) term.
    d1 = yp - yt

    # Mass-balance term (same column slices as the PyTorch module).
    w1 = yp[:, D - 2:D - 1]                            # (tile_b, 1)
    w2 = yp[:, D - 1:D]                                # (tile_b, 1)
    temp = yp[:, :M] * w1 + yp[:, M:2 * M] * w2        # (tile_b, M)
    d2 = temp - fr

    if batch % tile_b != 0:
        # Ragged (or oversized) tile: rows beyond the true batch contain
        # garbage from the partial block read -> mask diffs to 0 before
        # squaring. jnp.where is a select, so garbage NaN/Inf cannot leak.
        i = pl.program_id(0)
        limit = batch - i * tile_b
        row = jax.lax.broadcasted_iota(jnp.int32, (tile_b, 1), 0)
        valid = row < limit
        d1 = jnp.where(valid, d1, 0.0)
        d2 = jnp.where(valid, d2, 0.0)

    colsum1 = jnp.sum(d1 * d1, axis=0, keepdims=True)  # (1, D)
    colsum2 = jnp.sum(d2 * d2, axis=0, keepdims=True)  # (1, M)

    out_ref[...] = jnp.zeros((1, 8, _LANE), jnp.float32)
    out_ref[0, 0:1, 0:D] = colsum1
    out_ref[0, 1:2, 0:M] = colsum2


def _reference(y_pred, y, original_fraction, beta1, beta2):
    """Pure-JAX reference (also used as the tiny-problem fused-XLA fallback)."""
    m = original_fraction.shape[1]
    y_pred = y_pred.astype(jnp.float32)
    y = y.astype(jnp.float32)
    original_fraction = original_fraction.astype(jnp.float32)
    loss1 = jnp.mean((y_pred - y) ** 2)
    temp = (y_pred[:, :m] * y_pred[:, -2][:, None]
            + y_pred[:, m:2 * m] * y_pred[:, -1][:, None])
    massloss = jnp.mean((temp - original_fraction) ** 2)
    return beta1 * massloss + beta2 * loss1


def mass_balance_loss(y_pred, y, original_fraction, beta1, beta2, *,
                      tb_max=8192, min_pallas_elements=65536):
    """total = beta1 * MSE(temp, frac) + beta2 * MSE(y_pred, y)."""
    y_pred = jnp.asarray(y_pred)
    y = jnp.asarray(y)
    original_fraction = jnp.asarray(original_fraction)

    B, D = y_pred.shape
    M = original_fraction.shape[1]
    if y.shape != (B, D):
        raise ValueError(f"y shape {y.shape} != y_pred shape {(B, D)}")
    if original_fraction.shape[0] != B:
        raise ValueError("original_fraction batch mismatch")
    if D < max(2 * M, 2):
        raise ValueError("y_pred needs at least max(2*M, 2) columns")

    if B * D < min_pallas_elements:
        # Tiny problem: pallas_call fixed overhead dominates; let XLA fuse.
        return _reference(y_pred, y, original_fraction, beta1, beta2)

    # Batch tile: big enough to amortize per-step pipeline overhead, small
    # enough that the (lane-padded) double-buffered VMEM working set stays
    # well under every generation's VMEM (incl. v7x's 64 MiB).
    tb = min(int(tb_max), _round_up(B, _SUBLANE_PAD))
    tb = max(_SUBLANE_PAD, _round_up(tb, _SUBLANE_PAD))
    n_tiles = -(-B // tb)

    kernel = functools.partial(
        _mass_balance_kernel,
        batch=int(B), tile_b=int(tb), material_num=int(M), dim=int(D))

    cost = pl.CostEstimate(
        flops=3 * B * D + 6 * B * M,
        transcendentals=0,
        bytes_accessed=(B * D * (y_pred.dtype.itemsize + y.dtype.itemsize)
                        + B * M * original_fraction.dtype.itemsize
                        + n_tiles * 8 * _LANE * 4))

    partials = pl.pallas_call(
        kernel,
        out_shape=jax.ShapeDtypeStruct((n_tiles, 8, _LANE), jnp.float32),
        grid_spec=pltpu.PrefetchScalarGridSpec(
            num_scalar_prefetch=0,
            grid=(n_tiles,),
            in_specs=[
                pl.BlockSpec((tb, D), lambda i: (i, 0)),
                pl.BlockSpec((tb, D), lambda i: (i, 0)),
                pl.BlockSpec((tb, M), lambda i: (i, 0)),
            ],
            out_specs=pl.BlockSpec((1, 8, _LANE), lambda i: (i, 0, 0)),
        ),
        compiler_params=pltpu.CompilerParams(
            dimension_semantics=("parallel",),   # tiles independent -> megacore
            vmem_limit_bytes=32 * 1024 * 1024,
        ),
        cost_estimate=cost,
    )(y_pred, y, original_fraction)

    # Tiny cross-tile reduction + scaling stay in the wrapper so beta1/beta2
    # are traced (no recompile per value) and accumulation accuracy is good.
    sum1 = jnp.sum(partials[:, 0, :D])
    sum2 = jnp.sum(partials[:, 1, :M])
    return (beta2 * sum1 * (1.0 / (B * D))
            + beta1 * sum2 * (1.0 / (B * M)))


if __name__ == "__main__":
    beta1, beta2 = 0.5, 1.0
    key = jax.random.PRNGKey(0)

    # (B, M, tb_max, dtype): single oversized tile, single ragged tile,
    # multi-tile with ragged tail, and bf16 inputs (D = 2M + 2 as the module
    # implies). min_pallas_elements=0 forces the Pallas path for these small
    # test shapes.
    cases = [
        (8,    4, 8192, jnp.float32),
        (300,  4, 8192, jnp.float32),
        (1000, 4, 256,  jnp.float32),
        (512,  4, 128,  jnp.bfloat16),
    ]

    for B, M, tb_max, dtype in cases:
        D = 2 * M + 2
        key, k1, k2, k3 = jax.random.split(key, 4)
        y_pred = jax.random.normal(k1, (B, D), dtype=jnp.float32).astype(dtype)
        y_true = jax.random.normal(k2, (B, D), dtype=jnp.float32).astype(dtype)
        frac = jax.random.uniform(k3, (B, M), dtype=jnp.float32).astype(dtype)

        loss = mass_balance_loss(y_pred, y_true, frac, beta1, beta2,
                                 tb_max=tb_max, min_pallas_elements=0)
        loss = jax.block_until_ready(loss)

        ref = _reference(y_pred, y_true, frac, beta1, beta2)
        tol = 1e-5 if dtype == jnp.float32 else 1e-3
        assert jnp.allclose(loss, ref, rtol=tol, atol=tol), (B, dtype, loss, ref)

    # Exercise the tiny-problem fused-XLA fallback (default threshold).
    key, k1, k2, k3 = jax.random.split(key, 4)
    yp_s = jax.random.normal(k1, (16, 10), dtype=jnp.float32)
    yt_s = jax.random.normal(k2, (16, 10), dtype=jnp.float32)
    fr_s = jax.random.uniform(k3, (16, 4), dtype=jnp.float32)
    loss_fb = jax.block_until_ready(
        mass_balance_loss(yp_s, yt_s, fr_s, beta1, beta2))
    ref_fb = _reference(yp_s, yt_s, fr_s, beta1, beta2)
    assert jnp.allclose(loss_fb, ref_fb, rtol=1e-6, atol=1e-6)

    print("KERNEL_OK")
</pallas_src>

<mosaic_0001>
module attributes {stable_mosaic.version = 11 : i64} {
  func.func @_mass_balance_kernel(%arg0: i32, %arg1: memref<16x10xf32, #tpu.memory_space<vmem>>, %arg2: memref<16x10xf32, #tpu.memory_space<vmem>>, %arg3: memref<16x4xf32, #tpu.memory_space<vmem>>, %arg4: memref<1x8x128xf32, #tpu.memory_space<vmem>>) attributes {dimension_semantics = [#tpu.dimension_semantics<parallel>], iteration_bounds = array<i64: 1>, scalar_prefetch = 0 : i64, scratch_operands = 0 : i64, tpu.core_type = #tpu.core_type<tc>, window_params = [{transform_indices = @transform_0, window_bounds = array<i64: 16, 10>}, {transform_indices = @transform_1, window_bounds = array<i64: 16, 10>}, {transform_indices = @transform_2, window_bounds = array<i64: 16, 4>}, {transform_indices = @transform_3, window_bounds = array<i64: 1, 8, 128>}]} {
    %c0 = arith.constant 0 : index
    %c0_0 = arith.constant 0 : index
    %0 = vector.load %arg1[%c0, %c0_0] : memref<16x10xf32, #tpu.memory_space<vmem>>, vector<16x10xf32>
    %c0_1 = arith.constant 0 : index
    %c0_2 = arith.constant 0 : index
    %1 = vector.load %arg2[%c0_1, %c0_2] : memref<16x10xf32, #tpu.memory_space<vmem>>, vector<16x10xf32>
    %c0_3 = arith.constant 0 : index
    %c0_4 = arith.constant 0 : index
    %2 = vector.load %arg3[%c0_3, %c0_4] : memref<16x4xf32, #tpu.memory_space<vmem>>, vector<16x4xf32>
    %3 = arith.subf %0, %1 : vector<16x10xf32>
    %4 = vector.extract_strided_slice %0 {offsets = [0, 8], sizes = [16, 1], strides = [1, 1]} : vector<16x10xf32> to vector<16x1xf32>
    %5 = vector.extract_strided_slice %0 {offsets = [0, 9], sizes = [16, 1], strides = [1, 1]} : vector<16x10xf32> to vector<16x1xf32>
    %6 = vector.extract_strided_slice %0 {offsets = [0, 0], sizes = [16, 4], strides = [1, 1]} : vector<16x10xf32> to vector<16x4xf32>
    %7 = vector.broadcast %4 : vector<16x1xf32> to vector<16x4xf32>
    %8 = arith.mulf %6, %7 : vector<16x4xf32>
    %9 = vector.extract_strided_slice %0 {offsets = [0, 4], sizes = [16, 4], strides = [1, 1]} : vector<16x10xf32> to vector<16x4xf32>
    %10 = vector.broadcast %5 : vector<16x1xf32> to vector<16x4xf32>
    %11 = arith.mulf %9, %10 : vector<16x4xf32>
    %12 = arith.addf %8, %11 : vector<16x4xf32>
    %13 = arith.subf %12, %2 : vector<16x4xf32>
    %c16_i32 = arith.constant 16 : i32
    %14 = arith.muli %arg0, %c16_i32 : i32
    %c8_i32 = arith.constant 8 : i32
    %15 = arith.subi %c8_i32, %14 : i32
    %16 = tpu.iota {dimensions = array<i32: 0>} : vector<16x1xi32>
    %17 = vector.broadcast %15 : i32 to vector<16x1xi32>
    %18 = arith.cmpi slt, %16, %17 : vector<16x1xi32>
    %cst = arith.constant 0.000000e+00 : f32
    %19 = vector.shape_cast %18 : vector<16x1xi1> to vector<16x1xi1>
    %20 = vector.broadcast %19 : vector<16x1xi1> to vector<16x10xi1>
    %21 = vector.broadcast %cst : f32 to vector<16x10xf32>
    %22 = arith.select %20, %3, %21 : vector<16x10xi1>, vector<16x10xf32>
    %cst_5 = arith.constant 0.000000e+00 : f32
    %23 = vector.shape_cast %18 : vector<16x1xi1> to vector<16x1xi1>
    %24 = vector.broadcast %23 : vector<16x1xi1> to vector<16x4xi1>
    %25 = vector.broadcast %cst_5 : f32 to vector<16x4xf32>
    %26 = arith.select %24, %13, %25 : vector<16x4xi1>, vector<16x4xf32>
    %27 = arith.mulf %22, %22 : vector<16x10xf32>
    %cst_6 = arith.constant dense<0.000000e+00> : vector<10xf32>
    %28 = vector.multi_reduction <add>, %27, %cst_6 [0] : vector<16x10xf32> to vector<10xf32>
    %29 = vector.shape_cast %28 : vector<10xf32> to vector<1x10xf32>
    %30 = arith.mulf %26, %26 : vector<16x4xf32>
    %cst_7 = arith.constant dense<0.000000e+00> : vector<4xf32>
    %31 = vector.multi_reduction <add>, %30, %cst_7 [0] : vector<16x4xf32> to vector<4xf32>
    %32 = vector.shape_cast %31 : vector<4xf32> to vector<1x4xf32>
    %cst_8 = arith.constant 0.000000e+00 : f32
    %33 = vector.broadcast %cst_8 : f32 to vector<1x8x128xf32>
    %c0_9 = arith.constant 0 : index
    %c0_10 = arith.constant 0 : index
    %c0_11 = arith.constant 0 : index
    %34 = vector.load %arg4[%c0_9, %c0_10, %c0_11] : memref<1x8x128xf32, #tpu.memory_space<vmem>>, vector<1x8x128xf32>
    tpu.vector_store %arg4[%c0_9, %c0_10, %c0_11], %33 {strides = array<i32>} : memref<1x8x128xf32, #tpu.memory_space<vmem>>, vector<1x8x128xf32>,
    %c0_12 = arith.constant 0 : index
    %c0_13 = arith.constant 0 : index
    %c0_14 = arith.constant 0 : index
    %35 = vector.load %arg4[%c0_12, %c0_13, %c0_14] : memref<1x8x128xf32, #tpu.memory_space<vmem>>, vector<1x1x10xf32>
    %36 = vector.shape_cast %35 : vector<1x1x10xf32> to vector<1x10xf32>
    %37 = vector.shape_cast %29 : vector<1x10xf32> to vector<1x1x10xf32>
    tpu.vector_store %arg4[%c0_12, %c0_13, %c0_14], %37 {strides = array<i32>} : memref<1x8x128xf32, #tpu.memory_space<vmem>>, vector<1x1x10xf32>,
    %c0_15 = arith.constant 0 : index
    %c1 = arith.constant 1 : index
    %c0_16 = arith.constant 0 : index
    %38 = vector.load %arg4[%c0_15, %c1, %c0_16] : memref<1x8x128xf32, #tpu.memory_space<vmem>>, vector<1x1x4xf32>
    %39 = vector.shape_cast %38 : vector<1x1x4xf32> to vector<1x4xf32>
    %40 = vector.shape_cast %32 : vector<1x4xf32> to vector<1x1x4xf32>
    tpu.vector_store %arg4[%c0_15, %c1, %c0_16], %40 {strides = array<i32>} : memref<1x8x128xf32, #tpu.memory_space<vmem>>, vector<1x1x4xf32>,
    return
  }
  func.func @transform_0(%arg0: i32) -> (i32, i32) {
    %c0_i32 = arith.constant 0 : i32
    %c0_i32_0 = arith.constant 0 : i32
    return %arg0, %c0_i32 : i32, i32
  }
  func.func @transform_1(%arg0: i32) -> (i32, i32) {
    %c0_i32 = arith.constant 0 : i32
    %c0_i32_0 = arith.constant 0 : i32
    return %arg0, %c0_i32 : i32, i32
  }
  func.func @transform_2(%arg0: i32) -> (i32, i32) {
    %c0_i32 = arith.constant 0 : i32
    %c0_i32_0 = arith.constant 0 : i32
    return %arg0, %c0_i32 : i32, i32
  }
  func.func @transform_3(%arg0: i32) -> (i32, i32, i32) {
    %c0_i32 = arith.constant 0 : i32
    %c0_i32_0 = arith.constant 0 : i32
    %c0_i32_1 = arith.constant 0 : i32
    return %arg0, %c0_i32, %c0_i32_0 : i32, i32, i32
  }
}

</mosaic_0001>

<llo_original>
// kernel: tpu_custom_call.1
$region0: #{tpu_custom_call.1}
  #allocation0 [shape = 'u32[]', space=smem, size = 0x4, offset = 0x4, fixed_abs, tag = 'smem constant byte address 0x4 - core index']
  #allocation1 [shape = 'u32[144,128]{1,0:T(1,128)}', space=vmem, size = 0x12000, scoped, tag = 'internal scratch']
  %s0 = inlined_call_operand.vmem [shape: f32[8,10], index: 0, kind: input, shape index: {}]
  %s1 = inlined_call_operand.hbm [shape: f32[8,10], index: 1, kind: input, shape index: {}]
  %s2 = inlined_call_operand.vmem [shape: f32[8,4], index: 2, kind: input, shape index: {}]
  %s3 = inlined_call_operand.hbm [shape: f32[1,8,128], index: 3, kind: output, shape index: {}]
  %s4 = sld [smem:[#allocation0]]
  $region26: #{tpu_custom_call.1} parent=0
    _
  %s6 = ssub.s32 1, %s4
  %s7 = scalar_select 0, %s6, %s4
  $region1: #{tpu_custom_call.1} parent=0
    #allocation2 [shape = 'u8[8192]{0}', space=vmem, size = 0x2000, scoped, tag = 'input window, operand 1, single buffered']
    #allocation3 [shape = 's32[1]{0}', space=sflag, size = 0x4, scoped, tag = 'scoped memory for tpu_custom_call.1']
    #allocation4 [shape = 's32[1]{0}', space=sflag, size = 0x4, scoped, tag = 'scoped memory for tpu_custom_call.1']
    #allocation5 [shape = 'u8[4096]{0}', space=vmem, size = 0x1000, scoped, tag = 'output window, operand 0, single buffered']
    %8 = vsyncpa [#allocation3], 0
    %9 = vsyncpa [#allocation4], 0
    // Predicated region
    $region2: #{tpu_custom_call.1} parent=1 // pred_check
      _
    $region3: #{tpu_custom_call.1} parent=1 // pred_check_branch
      %11 = sbr.rel (0) target = $region5
    $region4: #{tpu_custom_call.1} parent=1 // pred_region
      _
    $region5: #{tpu_custom_call.1} parent=1 // pred_fallthru
      _
    // Predicated region
    $region6: #{tpu_custom_call.1} parent=1 // pred_check
      _
    $region7: #{tpu_custom_call.1} parent=1 // pred_check_branch
      %13 = sbr.rel (0) target = $region9
    $region8: #{tpu_custom_call.1} parent=1 // pred_region
      %s15 = ssub.s32 256, 128
      %16 = vsyncadd [#allocation3], %s15
      %s17 = sshll.u32 [#allocation2], 4
      %s18 = int_to_ptr.vmem [resolvable:$true] %s17
      %23 = dma.hbm_to_vmem [thread:$0]  %s1, 128, %s18, [#allocation3], 128, 128, 8
    $region9: #{tpu_custom_call.1} parent=1 // pred_fallthru
      _
    // Predicated region
    $region10: #{tpu_custom_call.1} parent=1 // pred_check
      _
    $region11: #{tpu_custom_call.1} parent=1 // pred_check_branch
      %25 = sbr.rel (0) target = $region13
    $region12: #{tpu_custom_call.1} parent=1 // pred_region
      _
    $region13: #{tpu_custom_call.1} parent=1 // pred_fallthru
      _
    // Predicated region
    $region14: #{tpu_custom_call.1} parent=1 // pred_check
      _
    $region15: #{tpu_custom_call.1} parent=1 // pred_check_branch
      %27 = sbr.rel (0) target = $region17
    $region16: #{tpu_custom_call.1} parent=1 // pred_region
      %28 = dma.done [#allocation3], 256
    $region17: #{tpu_custom_call.1} parent=1 // pred_fallthru
      _
    %v29 = vld [vmem:[%s0] sm:$0xff]
    %v30 = vld [vmem:[%s0 + $0x8] sm:$0xff]
    %v31 = vld [vmem:[#allocation2] sm:$0xff]
    %v32 = vld [vmem:[#allocation2 + $0x8] sm:$0xff]
    %v33 = vld [vmem:[%s2] sm:$0xff]
    %v34 = vld [vmem:[%s2 + $0x8] sm:$0xff]
    %v35 = vsub.f32 %v29, %v31
    %v36 = vsub.f32 %v30, %v32
    %38 = vset.pattern.permute.xlu0 8
    %39 = vperm.xlu0 %38, %v29
    %v40 = vpop.permute.xlu0 %39
    %43 = vset.pattern.permute.xlu0 8
    %44 = vperm.xlu0 %43, %v30
    %v45 = vpop.permute.xlu0 %44
    %v47 = vmul.f32 %v29, %v40
    %v48 = vmul.f32 %v30, %v45
    %49 = vset.pattern.permute.xlu0 9
    %50 = vperm.xlu0 %49, %v29
    %v51 = vpop.permute.xlu0 %50
    %53 = vset.pattern.permute.xlu0 9
    %54 = vperm.xlu0 %53, %v30
    %v55 = vpop.permute.xlu0 %54
    %v57 = vmul.f32 %v29, %v51
    %v58 = vmul.f32 %v30, %v55
    %61 = vrot.lane.b32.xlu0 %v57, 124
    %v62 = vpop.permute.xlu0 %61
    %63 = vrot.lane.b32.xlu0 %v58, 124
    %v64 = vpop.permute.xlu0 %63
    %v67 = vadd.f32 %v47, %v62
    %v68 = vadd.f32 %v48, %v64
    %v69 = vsub.f32 %v67, %v33
    %v70 = vsub.f32 %v68, %v34
    %s71 = smul.u32 0, 16
    %s72 = ssub.s32 8, %s71
    %v73 = vlaneseq
    %v74 = vshrl.u32 %v73, 7
    %v75 = vadd.s32 %v74, 8
    %v76 = vstv %s72
    %vm77 = vcmp.lt.s32.totalorder %v74, %v76
    %vm78 = vcmp.lt.s32.totalorder %v75, %v76
    %v79 = vsel %vm77, 1, 0
    %v80 = vsel %vm78, 1, 0
    %vm81 = vcmp.eq.s32.totalorder %v79, 1
    %vm82 = vcmp.eq.s32.totalorder %v80, 1
    %v83 = vsel %vm81, %v35, 0.0
    %v84 = vsel %vm82, %v36, 0.0
    %v85 = vsel %vm81, %v69, 0.0
    %v86 = vsel %vm82, %v70, 0.0
    %v87 = vmul.f32 %v83, %v83
    %v88 = vmul.f32 %v84, %v84
    %vm89 = vcmask 80896
    %v90 = vsel %vm89, %v87, 0.0
    %v91 = vsel %vm89, %v88, 0.0
    %v92 = vadd.f32 %v90, %v91
    %v93 = vrot.slane %v92, 4
    %v94 = vadd.f32 %v92, %v93
    %v95 = vrot.slane %v94, 2
    %v96 = vadd.f32 %v94, %v95
    %v97 = vrot.slane %v96, 1
    %v98 = vadd.f32 %v96, %v97
    %v99 = vmul.f32 %v85, %v85
    %v100 = vmul.f32 %v86, %v86
    %vm101 = vcmask 31744
    %v102 = vsel %vm101, %v99, 0.0
    %v103 = vsel %vm101, %v100, 0.0
    %v104 = vadd.f32 %v102, %v103
    %v105 = vrot.slane %v104, 4
    %v106 = vadd.f32 %v104, %v105
    %v107 = vrot.slane %v106, 2
    %v108 = vadd.f32 %v106, %v107
    %v109 = vrot.slane %v108, 1
    %v110 = vadd.f32 %v108, %v109
    %111 = vst [vmem:[#allocation5] sm:$0xff] 0.0
    %vm112 = vcmask 73728
    %113 = vst.msk [vmem:[#allocation5] sm:$0x1] %vm112, %v98
    %vm114 = vcmask 24576
    %115 = vst.msk [vmem:[#allocation5 + $0x1] sm:$0x1] %vm114, %v110
    // Predicated region
    $region18: #{tpu_custom_call.1} parent=1 // pred_check
      _
    $region19: #{tpu_custom_call.1} parent=1 // pred_check_branch
      %117 = sbr.rel (0) target = $region21
    $region20: #{tpu_custom_call.1} parent=1 // pred_region
      %s119 = ssub.s32 128, 128
      %120 = vsyncadd [#allocation4], %s119
      %s122 = sshll.u32 [#allocation5], 4
      %s123 = int_to_ptr.vmem [resolvable:$true] %s122
      %125 = dma.vmem_to_hbm [thread:$0]  %s123, 128, %s3, [#allocation4]
    $region21: #{tpu_custom_call.1} parent=1 // pred_fallthru
      _
    // Predicated region
    $region22: #{tpu_custom_call.1} parent=1 // pred_check
      _
    $region23: #{tpu_custom_call.1} parent=1 // pred_check_branch
      %127 = sbr.rel (0) target = $region25
    $region24: #{tpu_custom_call.1} parent=1 // pred_region
      %128 = dma.done [#allocation4], 128
    $region25: #{tpu_custom_call.1} parent=1 // pred_fallthru
      _
    %129 = vsyncpa [#allocation3], 1
    %130 = vsyncpa [#allocation4], 1

</llo_original>
